<compile_context>
chip_gen: v6e
topology: v6e:2x2x1
jax: 0.10.0
libtpu: 0.0.40
codegen_flags: <defaults>
</compile_context>

<pallas_src>
import functools
import math

import jax
import jax.numpy as jnp
from jax.experimental import pallas as pl
from jax.experimental.pallas import tpu as pltpu

LANE = 128


def _round_up(x, m):
    return (x + m - 1) // m * m


def _choose_tiles(n):
    """(n_pad, tm, tk) for the (N, N) adjacency.

    Small graphs: one lane-dense tile (pad to 128).  Large graphs: tk = 512
    and the largest row tile (<= 2048) dividing n_pad, so the Y_l re-stream is
    ~6% of the A bytes and per-step grid overhead is amortized.
    """
    if n <= 512:
        n_pad = _round_up(n, LANE)
        return n_pad, n_pad, n_pad
    n_pad = _round_up(n, 512)
    tk = 512
    tm = 512
    for cand in (2048, 1024):
        if n_pad % cand == 0:
            tm = cand
            break
    return n_pad, tm, tk


# --------------------------------------------------------------------------
# Kernels
# --------------------------------------------------------------------------
def _transform_kernel(x_ref, w_ref, b_ref, y_ref):
    """Y tile = X tile @ [W_l | W_r] + [0 | b]  (f32 MXU accum, bf16 store)."""
    acc = jnp.dot(x_ref[...], w_ref[...], preferred_element_type=jnp.float32)
    y_ref[...] = (acc + b_ref[...]).astype(y_ref.dtype)


def _aggregate_kernel(ksched_ref, kcnt_ref, a_ref, yl_ref, yr_ref, o_ref,
                      acc_ref, *, apply_relu):
    """out tile = sum over occupied k of A[i,k] @ Y_l[k]  (+ Y_r[i], ReLU)."""
    i = pl.program_id(0)
    k = pl.program_id(1)
    cnt = kcnt_ref[i]          # number of occupied K tiles for this row block

    @pl.when(k == 0)
    def _():
        acc_ref[...] = jnp.zeros_like(acc_ref)

    # Steady state: pure MXU accumulate, skipped entirely on empty tiles.
    @pl.when(k < cnt)
    def _():
        acc_ref[...] += jnp.dot(a_ref[...], yl_ref[...],
                                preferred_element_type=jnp.float32)

    # Finalize at the last occupied tile (k==0 handles cnt==0 row blocks).
    @pl.when(k == jnp.maximum(cnt - 1, 0))
    def _():
        out = acc_ref[...] + yr_ref[...].astype(jnp.float32)
        if apply_relu:
            out = jnp.maximum(out, 0.0)
        o_ref[...] = out.astype(o_ref.dtype)


# --------------------------------------------------------------------------
# Block-sparse schedule (scalar-prefetch data)
# --------------------------------------------------------------------------
def build_tile_schedule(adj, tm, tk):
    """Per-row-block list of occupied (tm, tk) adjacency tiles.

    k_sched[i, k]: K-tile index visited at grid step (i, k); occupied tiles
                   first (original order), tail padded with the last occupied
                   index so consecutive tail steps dedupe their DMAs.
    counts[i]:     number of occupied K tiles for row block i.
    """
    n_pad = adj.shape[0]
    n_row, n_k = n_pad // tm, n_pad // tk
    occ = (adj.reshape(n_row, tm, n_k, tk) != 0).any(axis=(1, 3))
    counts = occ.sum(axis=1).astype(jnp.int32)
    ar = jnp.arange(n_k, dtype=jnp.int32)[None, :]
    keys = jnp.where(occ, ar, n_k + ar)              # occupied sort first
    order = jnp.argsort(keys, axis=1).astype(jnp.int32)
    last = jnp.take_along_axis(order, jnp.maximum(counts - 1, 0)[:, None],
                               axis=1)
    k_sched = jnp.where(ar < counts[:, None], order, last).astype(jnp.int32)
    return k_sched, counts


# --------------------------------------------------------------------------
# Per-layer wrapper
# --------------------------------------------------------------------------
def sage_layer(adj_bf16, k_sched, k_counts, x, w_l, w_r, b, *,
               apply_relu, tm, tk, out_dtype):
    """One SAGEConv layer.

    adj_bf16: (Npad, Npad) bf16 row-normalized adjacency.
    x: (Npad, Cin).  Returns (Npad, Cpad) `out_dtype` (true channels in [:Cout]).
    """
    n_pad = adj_bf16.shape[0]
    c_in = x.shape[1]
    c_out = w_l.shape[1]
    c_pad = _round_up(c_out, LANE)

    # Zero-pad weights/bias to lane-dense widths; concat [W_l | W_r]; the
    # bias lives in the W_r half so stage 2 has no separate bias stream.
    w_cat = jnp.zeros((c_in, 2 * c_pad), jnp.float32)
    w_cat = w_cat.at[: w_l.shape[0], :c_out].set(w_l)
    w_cat = w_cat.at[: w_r.shape[0], c_pad: c_pad + c_out].set(w_r)
    b_cat = jnp.zeros((1, 2 * c_pad), jnp.float32)
    b_cat = b_cat.at[0, c_pad: c_pad + c_out].set(b.reshape(-1))
    w_cat = w_cat.astype(x.dtype)   # bf16 MXU when activations are bf16

    n_row_tiles = n_pad // tm
    n_k_tiles = n_pad // tk

    # ---- Stage 1: Y = X @ [W_l | W_r] + [0 | b]  (small, 2*Cpad lanes) -----
    y = pl.pallas_call(
        _transform_kernel,
        out_shape=jax.ShapeDtypeStruct((n_pad, 2 * c_pad), jnp.bfloat16),
        grid_spec=pltpu.PrefetchScalarGridSpec(
            num_scalar_prefetch=0,
            grid=(n_row_tiles,),
            in_specs=[
                pl.BlockSpec((tm, c_in), lambda i: (i, 0)),
                pl.BlockSpec((c_in, 2 * c_pad), lambda i: (0, 0)),
                pl.BlockSpec((1, 2 * c_pad), lambda i: (0, 0)),
            ],
            out_specs=pl.BlockSpec((tm, 2 * c_pad), lambda i: (i, 0)),
        ),
        compiler_params=pltpu.CompilerParams(
            dimension_semantics=("parallel",),
        ),
    )(x, w_cat, b_cat)

    # ---- Stage 2: out = A @ Y_l + Y_r  (block-sparse tiled reduction) ------
    kernel = functools.partial(_aggregate_kernel, apply_relu=apply_relu)
    out = pl.pallas_call(
        kernel,
        out_shape=jax.ShapeDtypeStruct((n_pad, c_pad), out_dtype),
        grid_spec=pltpu.PrefetchScalarGridSpec(
            num_scalar_prefetch=2,                     # k_sched, k_counts
            grid=(n_row_tiles, n_k_tiles),             # reduction axis last
            in_specs=[
                # A tile: only occupied K tiles are visited (tail dedupes).
                pl.BlockSpec((tm, tk), lambda i, k, ks, kc: (i, ks[i, k])),
                # Y_l = Y[:, :Cpad], indexed by the same scheduled K tile.
                pl.BlockSpec((tk, c_pad), lambda i, k, ks, kc: (ks[i, k], 0)),
                # Y_r = Y[:, Cpad:], resident across the K loop.
                pl.BlockSpec((tm, c_pad), lambda i, k, ks, kc: (i, 1)),
            ],
            out_specs=pl.BlockSpec((tm, c_pad), lambda i, k, ks, kc: (i, 0)),
            scratch_shapes=[pltpu.VMEM((tm, c_pad), jnp.float32)],
        ),
        compiler_params=pltpu.CompilerParams(
            dimension_semantics=("parallel", "arbitrary"),
            vmem_limit_bytes=32 * 1024 * 1024,  # safe on v5e/v6e/v7x budgets
        ),
    )(k_sched, k_counts, adj_bf16, y, y)
    return out


# --------------------------------------------------------------------------
# Model glue
# --------------------------------------------------------------------------
def mean_adjacency(edge_index, num_nodes_pad):
    """Dense row-normalized adjacency A[i, j] = 1/deg(i) for edges j->i."""
    src, dst = edge_index[0], edge_index[1]
    a = jnp.zeros((num_nodes_pad, num_nodes_pad), jnp.float32)
    a = a.at[dst, src].add(1.0)
    deg = jnp.sum(a, axis=1, keepdims=True)
    return a / jnp.maximum(deg, 1.0)


def init_graphsage_params(key, in_channels, hidden_channels, out_channels,
                          n_layers=3):
    """Glorot-uniform-ish init matching SAGEConv shapes (stored as (Cin, Cout))."""
    if n_layers == 1:
        dims = [(in_channels, out_channels)]
    else:
        dims = [(in_channels, hidden_channels)]
        dims += [(hidden_channels, hidden_channels)] * (n_layers - 2)
        dims += [(hidden_channels, out_channels)]
    params = []
    for (c_in, c_out) in dims:
        key, k1, k2 = jax.random.split(key, 3)
        scale = jnp.sqrt(6.0 / (c_in + c_out))
        w_l = jax.random.uniform(k1, (c_in, c_out), jnp.float32, -scale, scale)
        w_r = jax.random.uniform(k2, (c_in, c_out), jnp.float32, -scale, scale)
        b = jnp.zeros((1, c_out), jnp.float32)
        params.append((w_l, w_r, b))
    return params


def graphsage_forward(x, edge_index, params, *, tm=None, tk=None):
    n = x.shape[0]
    out_channels = params[-1][0].shape[1]
    if tm is None or tk is None:
        n_pad, tm, tk = _choose_tiles(n)
    else:
        n_pad = _round_up(n, math.lcm(tm, tk))

    # Dense mean-adjacency built once, bf16 for the MXU / HBM stream, plus the
    # block-sparse tile schedule shared by all layers.
    adj = mean_adjacency(edge_index, n_pad).astype(jnp.bfloat16)
    k_sched, k_counts = build_tile_schedule(adj, tm, tk)

    if n_pad != n:
        x = jnp.pad(x, ((0, n_pad - n), (0, 0)))

    n_layers = len(params)
    for i, (w_l, w_r, b) in enumerate(params):
        last = i == n_layers - 1
        x = sage_layer(adj, k_sched, k_counts, x, w_l, w_r, b,
                       apply_relu=not last, tm=tm, tk=tk,
                       out_dtype=jnp.float32 if last else jnp.bfloat16)
        # dropout(p=0.5, training=False) -> identity
    return x[:n, :out_channels]


def graphsage_reference(x, edge_index, params):
    """Pure-JAX f32 reference of the same forward pass."""
    n = x.shape[0]
    src, dst = edge_index[0], edge_index[1]
    a = jnp.zeros((n, n), jnp.float32).at[dst, src].add(1.0)
    deg = jnp.maximum(jnp.sum(a, axis=1, keepdims=True), 1.0)
    a = a / deg
    h = x
    for i, (w_l, w_r, b) in enumerate(params):
        h = (a @ h) @ w_l + h @ w_r + b
        if i < len(params) - 1:
            h = jnp.maximum(h, 0.0)
    return h


if __name__ == "__main__":
    key = jax.random.PRNGKey(0)
    k_x, k_e, k_p, k_x2, k_e2 = jax.random.split(key, 5)

    in_channels, hidden_channels, out_channels = 16, 32, 8
    params = init_graphsage_params(k_p, in_channels, hidden_channels,
                                   out_channels, n_layers=3)

    # Check 1: tiny graph, single-tile path (default tiling).
    num_nodes, num_edges = 64, 256
    x = jax.random.normal(k_x, (num_nodes, in_channels), jnp.float32)
    edge_index = jax.random.randint(k_e, (2, num_edges), 0, num_nodes, jnp.int32)
    out = jax.block_until_ready(graphsage_forward(x, edge_index, params))
    assert out.shape == (num_nodes, out_channels)
    ref = graphsage_reference(x, edge_index, params)
    assert jnp.allclose(out, ref, rtol=5e-2, atol=5e-2), (
        float(jnp.max(jnp.abs(out - ref))))

    # Check 2: multi-tile path with empty adjacency tiles — exercises the
    # scalar-prefetch block-sparse schedule (skipped K tiles and an all-empty
    # row block).  Edges only touch nodes 0..99 so tiles over nodes 128..255
    # are empty.
    num_nodes2, num_edges2 = 200, 800
    x2 = jax.random.normal(k_x2, (num_nodes2, in_channels), jnp.float32)
    edge_index2 = jax.random.randint(k_e2, (2, num_edges2), 0, 100, jnp.int32)
    out2 = jax.block_until_ready(
        graphsage_forward(x2, edge_index2, params, tm=128, tk=128))
    assert out2.shape == (num_nodes2, out_channels)
    ref2 = graphsage_reference(x2, edge_index2, params)
    assert jnp.allclose(out2, ref2, rtol=5e-2, atol=5e-2), (
        float(jnp.max(jnp.abs(out2 - ref2))))

    print("KERNEL_OK")
</pallas_src>

<mosaic_0001>
module attributes {stable_mosaic.version = 11 : i64} {
  func.func @_transform_kernel(%arg0: i32, %arg1: memref<128x16xf32, #tpu.memory_space<vmem>>, %arg2: memref<16x256xf32, #tpu.memory_space<vmem>>, %arg3: memref<1x256xf32, #tpu.memory_space<vmem>>, %arg4: memref<128x256xbf16, #tpu.memory_space<vmem>>) attributes {dimension_semantics = [#tpu.dimension_semantics<parallel>], iteration_bounds = array<i64: 1>, scalar_prefetch = 0 : i64, scratch_operands = 0 : i64, tpu.core_type = #tpu.core_type<tc>, window_params = [{transform_indices = @transform_0, window_bounds = array<i64: 128, 16>}, {pipeline_mode = #tpu.pipeline_mode<synchronous>, transform_indices = @transform_1, window_bounds = array<i64: 16, 256>}, {pipeline_mode = #tpu.pipeline_mode<synchronous>, transform_indices = @transform_2, window_bounds = array<i64: 1, 256>}, {transform_indices = @transform_3, window_bounds = array<i64: 128, 256>}]} {
    %c0 = arith.constant 0 : index
    %c0_0 = arith.constant 0 : index
    %0 = vector.load %arg1[%c0, %c0_0] : memref<128x16xf32, #tpu.memory_space<vmem>>, vector<128x16xf32>
    %c0_1 = arith.constant 0 : index
    %c0_2 = arith.constant 0 : index
    %1 = vector.load %arg2[%c0_1, %c0_2] : memref<16x256xf32, #tpu.memory_space<vmem>>, vector<16x256xf32>
    %cst = arith.constant dense<0.000000e+00> : vector<128x256xf32>
    %2 = tpu.matmul %0, %1, %cst {dimension_numbers = #tpu.dot_dimension_numbers<[1], [0], [0], [1], [0, 0, 1, 1], [], []>} : vector<128x16xf32>, vector<16x256xf32>, vector<128x256xf32> -> vector<128x256xf32>
    %c0_3 = arith.constant 0 : index
    %c0_4 = arith.constant 0 : index
    %3 = vector.load %arg3[%c0_3, %c0_4] : memref<1x256xf32, #tpu.memory_space<vmem>>, vector<1x256xf32>
    %4 = vector.broadcast %3 : vector<1x256xf32> to vector<128x256xf32>
    %5 = arith.addf %2, %4 : vector<128x256xf32>
    %6 = arith.truncf %5 : vector<128x256xf32> to vector<128x256xbf16>
    %c0_5 = arith.constant 0 : index
    %c0_6 = arith.constant 0 : index
    %7 = vector.load %arg4[%c0_5, %c0_6] : memref<128x256xbf16, #tpu.memory_space<vmem>>, vector<128x256xbf16>
    tpu.vector_store %arg4[%c0_5, %c0_6], %6 {strides = array<i32>} : memref<128x256xbf16, #tpu.memory_space<vmem>>, vector<128x256xbf16>,
    return
  }
  func.func @transform_0(%arg0: i32) -> (i32, i32) {
    %c0_i32 = arith.constant 0 : i32
    %c0_i32_0 = arith.constant 0 : i32
    return %arg0, %c0_i32 : i32, i32
  }
  func.func @transform_1(%arg0: i32) -> (i32, i32) {
    %c0_i32 = arith.constant 0 : i32
    %c0_i32_0 = arith.constant 0 : i32
    %c0_i32_1 = arith.constant 0 : i32
    return %c0_i32, %c0_i32_0 : i32, i32
  }
  func.func @transform_2(%arg0: i32) -> (i32, i32) {
    %c0_i32 = arith.constant 0 : i32
    %c0_i32_0 = arith.constant 0 : i32
    %c0_i32_1 = arith.constant 0 : i32
    return %c0_i32, %c0_i32_0 : i32, i32
  }
  func.func @transform_3(%arg0: i32) -> (i32, i32) {
    %c0_i32 = arith.constant 0 : i32
    %c0_i32_0 = arith.constant 0 : i32
    return %arg0, %c0_i32 : i32, i32
  }
}

</mosaic_0001>

<llo_original>
// kernel: tpu_custom_call.1
$region0: #{tpu_custom_call.1}
  #allocation0 [shape = 'u32[]', space=smem, size = 0x4, offset = 0x4, fixed_abs, tag = 'smem constant byte address 0x4 - core index']
  #allocation1 [shape = 'u32[144,128]{1,0:T(1,128)}', space=vmem, size = 0x12000, scoped, tag = 'internal scratch']
  %s0 = inlined_call_operand.vmem [shape: f32[128,16], index: 0, kind: input, shape index: {}]
  %s1 = inlined_call_operand.vmem [shape: f32[16,256], index: 1, kind: input, shape index: {}]
  %s2 = inlined_call_operand.vmem [shape: f32[1,256], index: 2, kind: input, shape index: {}]
  %s3 = inlined_call_operand.hbm [shape: bf16[128,256], index: 3, kind: output, shape index: {}]
  %s4 = sld [smem:[#allocation0]]
  $region22: #{tpu_custom_call.1} parent=0
    _
  %s6 = ssub.s32 1, %s4
  %s7 = scalar_select 0, %s6, %s4
  $region1: #{tpu_custom_call.1} parent=0
    #allocation2 [shape = 'u8[65536]{0}', space=vmem, size = 0x10000, scoped, tag = 'output window, operand 0, single buffered']
    #allocation3 [shape = 's32[1]{0}', space=sflag, size = 0x4, scoped, tag = 'scoped memory for tpu_custom_call.1']
    %8 = vsyncpa [#allocation3], 0
    // Predicated region
    $region2: #{tpu_custom_call.1} parent=1 // pred_check
      _
    $region3: #{tpu_custom_call.1} parent=1 // pred_check_branch
      %10 = sbr.rel (0) target = $region5
    $region4: #{tpu_custom_call.1} parent=1 // pred_region
      _
    $region5: #{tpu_custom_call.1} parent=1 // pred_fallthru
      _
    // Predicated region
    $region6: #{tpu_custom_call.1} parent=1 // pred_check
      _
    $region7: #{tpu_custom_call.1} parent=1 // pred_check_branch
      %12 = sbr.rel (0) target = $region9
    $region8: #{tpu_custom_call.1} parent=1 // pred_region
      _
    $region9: #{tpu_custom_call.1} parent=1 // pred_fallthru
      _
    // Predicated region
    $region10: #{tpu_custom_call.1} parent=1 // pred_check
      _
    $region11: #{tpu_custom_call.1} parent=1 // pred_check_branch
      %14 = sbr.rel (0) target = $region13
    $region12: #{tpu_custom_call.1} parent=1 // pred_region
      _
    $region13: #{tpu_custom_call.1} parent=1 // pred_fallthru
      _
    %v15 = vld [vmem:[%s0] sm:$0xff]
    %v16 = vld [vmem:[%s0 + $0x8] sm:$0xff]
    %v17 = vld [vmem:[%s0 + $0x10] sm:$0xff]
    %v18 = vld [vmem:[%s0 + $0x18] sm:$0xff]
    %v19 = vld [vmem:[%s0 + $0x20] sm:$0xff]
    %v20 = vld [vmem:[%s0 + $0x28] sm:$0xff]
    %v21 = vld [vmem:[%s0 + $0x30] sm:$0xff]
    %v22 = vld [vmem:[%s0 + $0x38] sm:$0xff]
    %v23 = vld [vmem:[%s0 + $0x40] sm:$0xff]
    %v24 = vld [vmem:[%s0 + $0x48] sm:$0xff]
    %v25 = vld [vmem:[%s0 + $0x50] sm:$0xff]
    %v26 = vld [vmem:[%s0 + $0x58] sm:$0xff]
    %v27 = vld [vmem:[%s0 + $0x60] sm:$0xff]
    %v28 = vld [vmem:[%s0 + $0x68] sm:$0xff]
    %v29 = vld [vmem:[%s0 + $0x70] sm:$0xff]
    %v30 = vld [vmem:[%s0 + $0x78] sm:$0xff]
    %v31 = vld [vmem:[%s1] sm:$0xff]
    %v32 = vld [vmem:[%s1 + $0x8] sm:$0xff]
    %v33 = vld [vmem:[%s1 + $0x10] sm:$0xff]
    %v34 = vld [vmem:[%s1 + $0x18] sm:$0xff]
    %v35 = vld [vmem:[%s2] sm:$0x3]
    %v37 = vlaneseq
    %v38 = vshrl.u32 %v37, 7
    %v39 = vsub.s32 0, %v38
    %v40 = vrot.slane %v35, %v39
    %v41 = vlaneseq
    %v42 = vshrl.u32 %v41, 7
    %v43 = vsub.s32 1, %v42
    %v44 = vrot.slane %v35, %v43
    %vm47 = vcmask 130048
    %v49 = vsel %vm47, %v15, 0
    %v52 = vsel %vm47, %v16, 0
    %v55 = vsel %vm47, %v17, 0
    %v58 = vsel %vm47, %v18, 0
    %v61 = vsel %vm47, %v19, 0
    %v64 = vsel %vm47, %v20, 0
    %v67 = vsel %vm47, %v21, 0
    %v70 = vsel %vm47, %v22, 0
    %v73 = vsel %vm47, %v23, 0
    %v76 = vsel %vm47, %v24, 0
    %v79 = vsel %vm47, %v25, 0
    %v82 = vsel %vm47, %v26, 0
    %v85 = vsel %vm47, %v27, 0
    %v88 = vsel %vm47, %v28, 0
    %v91 = vsel %vm47, %v29, 0
    %v94 = vsel %vm47, %v30, 0
    %96 = vmatprep.subr.mxu0 0.0
    %97 = vmatpush1.msra.mxu0 0.0
    %98 = vmatprep.subr.mxu0 0.0
    %99 = vmatpush1.msra.mxu0 0.0
    %100 = vmatprep.subr.mxu0 0.0
    %101 = vmatpush1.msra.mxu0 0.0
    %102 = vmatprep.subr.mxu0 0.0
    %103 = vmatpush1.msra.mxu0 0.0
    %104 = vmatprep.subr.mxu0 0.0
    %105 = vmatpush1.msra.mxu0 0.0
    %106 = vmatprep.subr.mxu0 0.0
    %107 = vmatpush1.msra.mxu0 0.0
    %108 = vmatprep.subr.mxu0 0.0
    %109 = vmatpush1.msra.mxu0 0.0
    %110 = vmatprep.subr.mxu0 0.0
    %111 = vmatpush1.msra.mxu0 0.0
    %112 = vmatprep.subr.mxu0 0.0
    %113 = vmatpush1.msra.mxu0 0.0
    %114 = vmatprep.subr.mxu0 0.0
    %115 = vmatpush1.msra.mxu0 0.0
    %116 = vmatprep.subr.mxu0 0.0
    %117 = vmatpush1.msra.mxu0 0.0
    %118 = vmatprep.subr.mxu0 0.0
    %119 = vmatpush1.msra.mxu0 0.0
    %120 = vmatprep.subr.mxu0 0.0
    %121 = vmatpush1.msra.mxu0 0.0
    %122 = vmatprep.subr.mxu0 0.0
    %123 = vmatpush1.msra.mxu0 0.0
    %124 = vmatprep.subr.mxu0 %v34
    %125 = vmatpush1.msra.mxu0 %v33
    %126 = vmatprep.subr.mxu0 %v32
    %127 = vmatpush1.msra.mxu0 %v31
    %128 = vmatprep.subr.mxu0 0.0
    %129 = vmatpush2.msra.mxu0 0.0
    %130 = vmatprep.subr.mxu0 0.0
    %131 = vmatpush2.msra.mxu0 0.0
    %132 = vmatprep.subr.mxu0 0.0
    %133 = vmatpush2.msra.mxu0 0.0
    %134 = vmatprep.subr.mxu0 0.0
    %135 = vmatpush2.msra.mxu0 0.0
    %136 = vmatprep.subr.mxu0 0.0
    %137 = vmatpush2.msra.mxu0 0.0
    %138 = vmatprep.subr.mxu0 0.0
    %139 = vmatpush2.msra.mxu0 0.0
    %140 = vmatprep.subr.mxu0 0.0
    %141 = vmatpush2.msra.mxu0 0.0
    %142 = vmatprep.subr.mxu0 0.0
    %143 = vmatpush2.msra.mxu0 0.0
    %144 = vmatprep.subr.mxu0 0.0
    %145 = vmatpush2.msra.mxu0 0.0
    %146 = vmatprep.subr.mxu0 0.0
    %147 = vmatpush2.msra.mxu0 0.0
    %148 = vmatprep.subr.mxu0 0.0
    %149 = vmatpush2.msra.mxu0 0.0
    %150 = vmatprep.subr.mxu0 0.0
    %151 = vmatpush2.msra.mxu0 0.0
    %152 = vmatprep.subr.mxu0 0.0
    %153 = vmatpush2.msra.mxu0 0.0
    %154 = vmatprep.subr.mxu0 0.0
    %155 = vmatpush2.msra.mxu0 0.0
    %156 = vmatprep.subr.mxu0 0.0
    %157 = vmatpush2.msra.mxu0 0.0
    %158 = vmatprep.subr.mxu0 0.0
    %159 = vmatpush2.msra.mxu0 0.0
    %160 = vmatprep.mubr.f32.mxu0 0.0
    %161 = vmatmul.mubr.f32.gmra.mxu0 %v49
    %v162 = vpop.f32.mrf.mxu0
    %v163 = vadd.f32 %v40, %v162
    %v164 = vpop.f32.mrf.mxu0
    %v165 = vadd.f32 %v44, %v164
    %166 = vmatprep.mubr.f32.mxu0 0.0
    %167 = vmatmul.mubr.f32.gmra.mxu0 %v52
    %v168 = vpop.f32.mrf.mxu0
    %v169 = vadd.f32 %v40, %v168
    %v170 = vpop.f32.mrf.mxu0
    %v171 = vadd.f32 %v44, %v170
    %172 = vmatprep.mubr.f32.mxu0 0.0
    %173 = vmatmul.mubr.f32.gmra.mxu0 %v55
    %v174 = vpop.f32.mrf.mxu0
    %v175 = vadd.f32 %v40, %v174
    %v176 = vpop.f32.mrf.mxu0
    %v177 = vadd.f32 %v44, %v176
    %178 = vmatprep.mubr.f32.mxu0 0.0
    %179 = vmatmul.mubr.f32.gmra.mxu0 %v58
    %v180 = vpop.f32.mrf.mxu0
    %v181 = vadd.f32 %v40, %v180
    %v182 = vpop.f32.mrf.mxu0
    %v183 = vadd.f32 %v44, %v182
    %184 = vmatprep.mubr.f32.mxu0 0.0
    %185 = vmatmul.mubr.f32.gmra.mxu0 %v61
    %v186 = vpop.f32.mrf.mxu0
    %v187 = vadd.f32 %v40, %v186
    %v188 = vpop.f32.mrf.mxu0
    %v189 = vadd.f32 %v44, %v188
    %190 = vmatprep.mubr.f32.mxu0 0.0
    %191 = vmatmul.mubr.f32.gmra.mxu0 %v64
    %v192 = vpop.f32.mrf.mxu0
    %v193 = vadd.f32 %v40, %v192
    %v194 = vpop.f32.mrf.mxu0
    %v195 = vadd.f32 %v44, %v194
    %196 = vmatprep.mubr.f32.mxu0 0.0
    %197 = vmatmul.mubr.f32.gmra.mxu0 %v67
    %v198 = vpop.f32.mrf.mxu0
    %v199 = vadd.f32 %v40, %v198
    %v200 = vpop.f32.mrf.mxu0
    %v201 = vadd.f32 %v44, %v200
    %202 = vmatprep.mubr.f32.mxu0 0.0
    %203 = vmatmul.mubr.f32.gmra.mxu0 %v70
    %v204 = vpop.f32.mrf.mxu0
    %v205 = vadd.f32 %v40, %v204
    %v206 = vpop.f32.mrf.mxu0
    %v207 = vadd.f32 %v44, %v206
    %208 = vmatprep.mubr.f32.mxu0 0.0
    %209 = vmatmul.mubr.f32.gmra.mxu0 %v73
    %v210 = vpop.f32.mrf.mxu0
    %v211 = vadd.f32 %v40, %v210
    %v212 = vpop.f32.mrf.mxu0
    %v213 = vadd.f32 %v44, %v212
    %214 = vmatprep.mubr.f32.mxu0 0.0
    %215 = vmatmul.mubr.f32.gmra.mxu0 %v76
    %v216 = vpop.f32.mrf.mxu0
    %v217 = vadd.f32 %v40, %v216
    %v218 = vpop.f32.mrf.mxu0
    %v219 = vadd.f32 %v44, %v218
    %220 = vmatprep.mubr.f32.mxu0 0.0
    %221 = vmatmul.mubr.f32.gmra.mxu0 %v79
    %v222 = vpop.f32.mrf.mxu0
    %v223 = vadd.f32 %v40, %v222
    %v224 = vpop.f32.mrf.mxu0
    %v225 = vadd.f32 %v44, %v224
    %226 = vmatprep.mubr.f32.mxu0 0.0
    %227 = vmatmul.mubr.f32.gmra.mxu0 %v82
    %v228 = vpop.f32.mrf.mxu0
    %v229 = vadd.f32 %v40, %v228
    %v230 = vpop.f32.mrf.mxu0
    %v231 = vadd.f32 %v44, %v230
    %232 = vmatprep.mubr.f32.mxu0 0.0
    %233 = vmatmul.mubr.f32.gmra.mxu0 %v85
    %v234 = vpop.f32.mrf.mxu0
    %v235 = vadd.f32 %v40, %v234
    %v236 = vpop.f32.mrf.mxu0
    %v237 = vadd.f32 %v44, %v236
    %238 = vmatprep.mubr.f32.mxu0 0.0
    %239 = vmatmul.mubr.f32.gmra.mxu0 %v88
    %v240 = vpop.f32.mrf.mxu0
    %v241 = vadd.f32 %v40, %v240
    %v242 = vpop.f32.mrf.mxu0
    %v243 = vadd.f32 %v44, %v242
    %244 = vmatprep.mubr.f32.mxu0 0.0
    %245 = vmatmul.mubr.f32.gmra.mxu0 %v91
    %v246 = vpop.f32.mrf.mxu0
    %v247 = vadd.f32 %v40, %v246
    %v248 = vpop.f32.mrf.mxu0
    %v249 = vadd.f32 %v44, %v248
    %250 = vmatprep.mubr.f32.mxu0 0.0
    %251 = vmatmul.mubr.f32.gmra.mxu0 %v94
    %v252 = vpop.f32.mrf.mxu0
    %v253 = vadd.f32 %v40, %v252
    %v254 = vpop.f32.mrf.mxu0
    %v255 = vadd.f32 %v44, %v254
    %256 = vdwg.mxu0
    %v257 = vpack.c.bf16 %v169, %v163
    %v258 = vpack.c.bf16 %v171, %v165
    %v259 = vpack.c.bf16 %v181, %v175
    %v260 = vpack.c.bf16 %v183, %v177
    %v261 = vpack.c.bf16 %v193, %v187
    %v262 = vpack.c.bf16 %v195, %v189
    %v263 = vpack.c.bf16 %v205, %v199
    %v264 = vpack.c.bf16 %v207, %v201
    %v265 = vpack.c.bf16 %v217, %v211
    %v266 = vpack.c.bf16 %v219, %v213
    %v267 = vpack.c.bf16 %v229, %v223
    %v268 = vpack.c.bf16 %v231, %v225
    %v269 = vpack.c.bf16 %v241, %v235
    %v270 = vpack.c.bf16 %v243, %v237
    %v271 = vpack.c.bf16 %v253, %v247
    %v272 = vpack.c.bf16 %v255, %v249
    %v289 = vunpack.c.l.b16 %v257
    %v290 = vunpack.c.l.b16 %v258
    %v291 = vunpack.c.h.b16 %v257
    %v292 = vunpack.c.h.b16 %v258
    %v293 = vunpack.c.l.b16 %v259
    %v294 = vunpack.c.l.b16 %v260
    %v295 = vunpack.c.h.b16 %v259
    %v296 = vunpack.c.h.b16 %v260
    %v297 = vunpack.c.l.b16 %v261
    %v298 = vunpack.c.l.b16 %v262
    %v299 = vunpack.c.h.b16 %v261
    %v300 = vunpack.c.h.b16 %v262
    %v301 = vunpack.c.l.b16 %v263
    %v302 = vunpack.c.l.b16 %v264
    %v303 = vunpack.c.h.b16 %v263
    %v304 = vunpack.c.h.b16 %v264
    %v305 = vunpack.c.l.b16 %v265
    %v306 = vunpack.c.l.b16 %v266
    %v307 = vunpack.c.h.b16 %v265
    %v308 = vunpack.c.h.b16 %v266
    %v309 = vunpack.c.l.b16 %v267
    %v310 = vunpack.c.l.b16 %v268
    %v311 = vunpack.c.h.b16 %v267
    %v312 = vunpack.c.h.b16 %v268
    %v313 = vunpack.c.l.b16 %v269
    %v314 = vunpack.c.l.b16 %v270
    %v315 = vunpack.c.h.b16 %v269
    %v316 = vunpack.c.h.b16 %v270
    %v317 = vunpack.c.l.b16 %v271
    %v318 = vunpack.c.l.b16 %v272
    %v319 = vunpack.c.h.b16 %v271
    %v320 = vunpack.c.h.b16 %v272
    %v321 = vpack.c.b16 %v290, %v289
    %v322 = vpack.c.b16 %v292, %v291
    %v323 = vpack.c.b16 %v294, %v293
    %v324 = vpack.c.b16 %v296, %v295
    %v325 = vpack.c.b16 %v298, %v297
    %v326 = vpack.c.b16 %v300, %v299
    %v327 = vpack.c.b16 %v302, %v301
    %v328 = vpack.c.b16 %v304, %v303
    %v329 = vpack.c.b16 %v306, %v305
    %v330 = vpack.c.b16 %v308, %v307
    %v331 = vpack.c.b16 %v310, %v309
    %v332 = vpack.c.b16 %v312, %v311
    %v333 = vpack.c.b16 %v314, %v313
    %v334 = vpack.c.b16 %v316, %v315
    %v335 = vpack.c.b16 %v318, %v317
    %v336 = vpack.c.b16 %v320, %v319
    %353 = vst [vmem:[#allocation2] sm:$0xff] %v321
    %354 = vst [vmem:[#allocation2 + $0x8] sm:$0xff] %v322
    %355 = vst [vmem:[#allocation2 + $0x10] sm:$0xff] %v323
    %356 = vst [vmem:[#allocation2 + $0x18] sm:$0xff] %v324
    %357 = vst [vmem:[#allocation2 + $0x20] sm:$0xff] %v325
    %358 = vst [vmem:[#allocation2 + $0x28] sm:$0xff] %v326
    %359 = vst [vmem:[#allocation2 + $0x30] sm:$0xff] %v327
    %360 = vst [vmem:[#allocation2 + $0x38] sm:$0xff] %v328
    %361 = vst [vmem:[#allocation2 + $0x40] sm:$0xff] %v329
    %362 = vst [vmem:[#allocation2 + $0x48] sm:$0xff] %v330
    %363 = vst [vmem:[#allocation2 + $0x50] sm:$0xff] %v331
    %364 = vst [vmem:[#allocation2 + $0x58] sm:$0xff] %v332
    %365 = vst [vmem:[#allocation2 + $0x60] sm:$0xff] %v333
    %366 = vst [vmem:[#allocation2 + $0x68] sm:$0xff] %v334
    %367 = vst [vmem:[#allocation2 + $0x70] sm:$0xff] %v335
    %368 = vst [vmem:[#allocation2 + $0x78] sm:$0xff] %v336
    // Predicated region
    $region14: #{tpu_custom_call.1} parent=1 // pred_check
      _
    $region15: #{tpu_custom_call.1} parent=1 // pred_check_branch
      %370 = sbr.rel (0) target = $region17
    $region16: #{tpu_custom_call.1} parent=1 // pred_region
      %s372 = ssub.s32 2048, 2048
      %373 = vsyncadd [#allocation3], %s372
      %s374 = sshll.u32 [#allocation2], 4
      %s375 = int_to_ptr.vmem [resolvable:$true] %s374
      %380 = dma.vmem_to_hbm [thread:$0]  %s375, 2048, %s3, [#allocation3], 128, 128, 8
    $region17: #{tpu_custom_call.1} parent=1 // pred_fallthru
      _
    // Predicated region
    $region18: #{tpu_custom_call.1} parent=1 // pred_check
      _
    $region19: #{tpu_custom_call.1} parent=1 // pred_check_branch
      %382 = sbr.rel (0) target = $region21
    $region20: #{tpu_custom_call.1} parent=1 // pred_region
      %383 = dma.done [#allocation3], 2048
    $region21: #{tpu_custom_call.1} parent=1 // pred_fallthru
      _
    %384 = vsyncpa [#allocation3], 1

</llo_original>
